<compile_context>
chip_gen: v6e
topology: v6e:2x2x1
jax: 0.10.0
libtpu: 0.0.40
codegen_flags: <defaults>
</compile_context>

<pallas_src>
import jax
import jax.numpy as jnp
from jax.experimental import pallas as pl
from jax.experimental.pallas import tpu as pltpu


TILE_S = 512  # lane tile for the spatial axis (sweet spot per tiling sweep)


def _make_detect_layer_kernel(no: int, stride: float, with_raw: bool):
    """Fused 1x1-conv + YOLO box decode kernel for one detection layer.

    Refs per grid step (n = batch index, j = spatial tile index):
      x_ref    : (1, C_in, TS)   bf16 input feature tile (lanes = spatial)
      w_ref    : (C_out, C_in)   bf16 1x1 conv weight (C_out padded to mult-8)
      b_ref    : (C_out, 1)      f32 conv bias
      goff_ref : (2, TS)         f32, row0 = (x_cell-0.5)*stride,
                                      row1 = (y_cell-0.5)*stride
      an4_ref  : (C_out, 1)      f32, 4*anchor on the w/h rows, 0 elsewhere
      raw_ref  : (1, C_out, TS)  f32 raw conv output        (only if with_raw)
      dec_ref  : (1, C_out, TS)  f32 decoded predictions
    """
    two_stride = 2.0 * stride

    def _decode(raw, goff_ref, an4_ref):
        # sigmoid on everything (exp lands on the EUP slot)
        y = jax.nn.sigmoid(raw)
        c_out = raw.shape[0]
        # per-row channel index c = row % no   (row = anchor * no + c)
        c_idx = jax.lax.broadcasted_iota(jnp.int32, (c_out, 1), 0) % no
        is_gx = c_idx == 0
        is_xy = c_idx < 2
        is_wh = jnp.logical_and(c_idx >= 2, c_idx < 4)
        # single broadcast-select builds the grid offset; constants pre-folded
        g = jnp.where(is_gx, goff_ref[0:1, :], goff_ref[1:2, :])
        xy = y * two_stride + g            # == (y*2 - 0.5 + grid) * stride
        wh = an4_ref[...] * (y * y)        # == (y*2)**2 * anchor_grid
        return jnp.where(is_xy, xy, jnp.where(is_wh, wh, y))

    if with_raw:
        def kernel(x_ref, w_ref, b_ref, goff_ref, an4_ref, raw_ref, dec_ref):
            raw = jnp.dot(w_ref[...], x_ref[0],
                          preferred_element_type=jnp.float32) + b_ref[...]
            raw_ref[0] = raw.astype(raw_ref.dtype)
            dec_ref[0] = _decode(raw, goff_ref, an4_ref).astype(dec_ref.dtype)
        return kernel

    def kernel(x_ref, w_ref, b_ref, goff_ref, an4_ref, dec_ref):
        raw = jnp.dot(w_ref[...], x_ref[0],
                      preferred_element_type=jnp.float32) + b_ref[...]
        dec_ref[0] = _decode(raw, goff_ref, an4_ref).astype(dec_ref.dtype)
    return kernel


def _detect_layer(x_flat, w, b, goff, an4, *, no, stride, return_raw,
                  tile_s=TILE_S):
    """Run the fused per-layer kernel.

    x_flat : (bs, C_in, S) bf16      w : (C_out, C_in) bf16
    b, an4 : (C_out, 1) f32          goff : (2, S) f32
    Returns (raw, dec) with raw=None when return_raw=False; both (bs, C_out, S) f32.
    """
    bs, c_in, s = x_flat.shape
    c_out = w.shape[0]

    ts = s if s <= tile_s else tile_s       # full-extent for small maps
    ns = pl.cdiv(s, ts)

    kernel = _make_detect_layer_kernel(no, float(stride), return_raw)

    dec_shape = jax.ShapeDtypeStruct((bs, c_out, s), jnp.float32)
    dec_spec = pl.BlockSpec((1, c_out, ts), lambda n, j: (n, 0, j))
    if return_raw:
        out_shape = (jax.ShapeDtypeStruct((bs, c_out, s), jnp.float32),
                     dec_shape)
        out_specs = (pl.BlockSpec((1, c_out, ts), lambda n, j: (n, 0, j)),
                     dec_spec)
    else:
        out_shape = dec_shape
        out_specs = dec_spec

    n_out = 2 if return_raw else 1
    cost = pl.CostEstimate(
        flops=int(2 * bs * c_out * c_in * s + 8 * bs * c_out * s),
        transcendentals=int(bs * c_out * s),
        bytes_accessed=int(bs * c_in * s * 2 + c_out * c_in * 2
                           + n_out * bs * c_out * s * 4 + 2 * s * 4
                           + 2 * c_out * 4),
    )

    result = pl.pallas_call(
        kernel,
        out_shape=out_shape,
        grid_spec=pl.GridSpec(
            grid=(bs, ns),
            in_specs=[
                pl.BlockSpec((1, c_in, ts), lambda n, j: (n, 0, j)),
                pl.BlockSpec((c_out, c_in), lambda n, j: (0, 0)),
                pl.BlockSpec((c_out, 1), lambda n, j: (0, 0)),
                pl.BlockSpec((2, ts), lambda n, j: (0, j)),
                pl.BlockSpec((c_out, 1), lambda n, j: (0, 0)),
            ],
            out_specs=out_specs,
        ),
        compiler_params=pltpu.CompilerParams(
            dimension_semantics=("parallel", "parallel"),
        ),
        cost_estimate=cost,
    )(x_flat, w, b, goff, an4)

    if return_raw:
        raw, dec = result
        return raw, dec
    return None, result


def detect_forward(xs, weights, biases, anchors, strides, nc=1, *,
                   return_raw=True):
    """Pallas equivalent of Detect.forward in eval mode.

    xs      : list of nl feature maps, NCHW (f32)
    weights : list of (C_out, C_in, 1, 1) 1x1-conv weights
    biases  : list of (C_out,) conv biases
    anchors : (nl, na, 2) float anchors (as registered in the module)
    strides : list of nl python floats (Detect.stride)
    Returns (z, x) like the PyTorch module in eval mode:
      z : (bs, sum_i na*ny_i*nx_i, no)
      x : list of (bs, na, ny, nx, no) raw (pre-sigmoid) conv outputs, or None
          when return_raw=False (z-only inference path; halves output HBM
          traffic and skips the XLA transposes).
    """
    nl = len(xs)
    na = anchors.shape[1]
    no = nc + 5
    c_out = na * no
    c_out_pad = -(-c_out // 8) * 8   # pad to a multiple of 8 sublanes

    x_out, zs = [], []
    for i in range(nl):
        x = xs[i]
        bs, c_in, ny, nx = x.shape
        s = ny * nx
        stride_i = float(strides[i])

        # bf16 at the HBM boundary (kernel accumulates in f32 on the MXU).
        x_flat = x.reshape(bs, c_in, s).astype(jnp.bfloat16)

        w = weights[i].reshape(c_out, c_in).astype(jnp.float32)
        w_p = (jnp.zeros((c_out_pad, c_in), jnp.float32)
               .at[:c_out].set(w).astype(jnp.bfloat16))
        b_p = (jnp.zeros((c_out_pad, 1), jnp.float32)
               .at[:c_out, 0].set(biases[i].astype(jnp.float32)))

        # Pre-folded grid offsets packed into a single (2, S) array.
        gy2, gx2 = jnp.meshgrid(jnp.arange(ny, dtype=jnp.float32),
                                jnp.arange(nx, dtype=jnp.float32),
                                indexing="ij")
        goff = jnp.stack([(gx2.reshape(s) - 0.5) * stride_i,
                          (gy2.reshape(s) - 0.5) * stride_i], axis=0)

        # Pre-folded 4*anchor on the w/h rows (row = a*no + c; c==2 -> w, c==3 -> h).
        anchor_grid = anchors[i].astype(jnp.float32) * stride_i   # (na, 2)
        row = jnp.arange(c_out)
        c_idx = row % no
        a_idx = row // no
        an4 = jnp.where(c_idx == 2, 4.0 * anchor_grid[a_idx, 0],
                        jnp.where(c_idx == 3, 4.0 * anchor_grid[a_idx, 1], 0.0))
        an4_p = jnp.zeros((c_out_pad, 1), jnp.float32).at[:c_out, 0].set(an4)

        raw, dec = _detect_layer(x_flat, w_p, b_p, goff, an4_p,
                                 no=no, stride=stride_i, return_raw=return_raw)

        # Pure layout plumbing (slice padding, view/permute/concat) stays in XLA.
        dec = dec[:, :c_out, :]
        dec5 = dec.reshape(bs, na, no, ny, nx).transpose(0, 1, 3, 4, 2)
        zs.append(dec5.reshape(bs, na * ny * nx, no))

        if return_raw:
            raw = raw[:, :c_out, :]
            raw5 = raw.reshape(bs, na, no, ny, nx).transpose(0, 1, 3, 4, 2)
            x_out.append(raw5)

    z = jnp.concatenate(zs, axis=1)
    return z, (x_out if return_raw else None)


def detect_ref(xs, weights, biases, anchors, strides, nc=1):
    """Pure-JAX reference mirroring PyTorch Detect.forward (eval mode).

    Uses the same bf16-cast conv operands as the kernel so the comparison
    tests the kernel itself (MXU bf16 products are exact in f32; only the
    accumulation order differs from the HIGHEST-precision einsum).
    """
    nl = len(xs)
    na = anchors.shape[1]
    no = nc + 5
    z, x_out = [], []
    for i in range(nl):
        x = xs[i].astype(jnp.bfloat16).astype(jnp.float32)
        bs, c_in, ny, nx = x.shape
        w = (weights[i].reshape(na * no, c_in)
             .astype(jnp.bfloat16).astype(jnp.float32))
        conv = jnp.einsum("bchw,oc->bohw", x, w,
                          precision=jax.lax.Precision.HIGHEST)
        conv = conv + biases[i].reshape(1, -1, 1, 1).astype(jnp.float32)
        xi = conv.reshape(bs, na, no, ny, nx).transpose(0, 1, 3, 4, 2)
        x_out.append(xi)

        yv, xv = jnp.meshgrid(jnp.arange(ny, dtype=jnp.float32),
                              jnp.arange(nx, dtype=jnp.float32), indexing="ij")
        grid = jnp.stack((xv, yv), 2).reshape(1, 1, ny, nx, 2)
        anchor_grid = (anchors[i].astype(jnp.float32)
                       * strides[i]).reshape(1, na, 1, 1, 2)
        y = jax.nn.sigmoid(xi)
        xy = (y[..., 0:2] * 2 - 0.5 + grid) * strides[i]
        wh = (y[..., 2:4] * 2) ** 2 * anchor_grid
        y = jnp.concatenate([xy, wh, y[..., 4:]], axis=-1)
        z.append(y.reshape(bs, -1, no))
    return jnp.concatenate(z, axis=1), x_out


if __name__ == "__main__":
    key = jax.random.PRNGKey(0)

    nc = 1
    anchors = jnp.asarray(
        [[10, 13, 16, 30, 33, 23],
         [30, 61, 62, 45, 59, 119],
         [116, 90, 156, 198, 373, 326]], dtype=jnp.float32).reshape(3, 3, 2)
    strides = [8.0, 16.0, 32.0]
    ch = [128, 256, 512]
    # S = 1024, 256, 64 : first layer exercises the 512-lane spatial tiling
    # (2 tiles), the others take the full-extent path.
    spatial = [(32, 32), (16, 16), (8, 8)]
    bs, na, no = 2, 3, nc + 5
    c_out = na * no

    keys = jax.random.split(key, 3 * len(ch))
    xs, weights, biases = [], [], []
    for i, (c_in, (ny, nx)) in enumerate(zip(ch, spatial)):
        kx, kw, kb = keys[3 * i], keys[3 * i + 1], keys[3 * i + 2]
        xs.append(jax.random.normal(kx, (bs, c_in, ny, nx), dtype=jnp.float32))
        weights.append(jax.random.normal(kw, (c_out, c_in, 1, 1),
                                         dtype=jnp.float32) / jnp.sqrt(1.0 * c_in))
        biases.append(0.1 * jax.random.normal(kb, (c_out,), dtype=jnp.float32))

    z, x_out = detect_forward(xs, weights, biases, anchors, strides, nc=nc,
                              return_raw=True)
    z = jax.block_until_ready(z)
    x_out = [jax.block_until_ready(t) for t in x_out]

    z_ref, x_ref = detect_ref(xs, weights, biases, anchors, strides, nc=nc)

    assert z.shape == z_ref.shape, (z.shape, z_ref.shape)
    for got, want in zip(x_out, x_ref):
        assert got.shape == want.shape, (got.shape, want.shape)
        assert bool(jnp.allclose(got, want, rtol=2e-3, atol=1e-2)), \
            float(jnp.max(jnp.abs(got - want)))
    assert bool(jnp.allclose(z, z_ref, rtol=2e-3, atol=1e-2)), \
        float(jnp.max(jnp.abs(z - z_ref)))

    # Also exercise the z-only inference path (raw output skipped entirely).
    z2, none_out = detect_forward(xs, weights, biases, anchors, strides, nc=nc,
                                  return_raw=False)
    z2 = jax.block_until_ready(z2)
    assert none_out is None
    assert bool(jnp.allclose(z2, z_ref, rtol=2e-3, atol=1e-2)), \
        float(jnp.max(jnp.abs(z2 - z_ref)))

    # TODO(synk): training-mode branch simply returns the raw x list (no
    # decode); only the eval-mode (decode) path is exercised here.
    print("KERNEL_OK")
</pallas_src>

<mosaic_0001>
module attributes {stable_mosaic.version = 11 : i64} {
  func.func @kernel(%arg0: i32, %arg1: i32, %arg2: memref<1x128x512xbf16, #tpu.memory_space<vmem>>, %arg3: memref<24x128xbf16, #tpu.memory_space<vmem>>, %arg4: memref<24x1xf32, #tpu.memory_space<vmem>>, %arg5: memref<2x512xf32, #tpu.memory_space<vmem>>, %arg6: memref<24x1xf32, #tpu.memory_space<vmem>>, %arg7: memref<1x24x512xf32, #tpu.memory_space<vmem>>, %arg8: memref<1x24x512xf32, #tpu.memory_space<vmem>>) attributes {dimension_semantics = [#tpu.dimension_semantics<parallel>, #tpu.dimension_semantics<parallel>], iteration_bounds = array<i64: 2, 2>, scalar_prefetch = 0 : i64, scratch_operands = 0 : i64, tpu.core_type = #tpu.core_type<tc>, window_params = [{transform_indices = @transform_0, window_bounds = array<i64: 1, 128, 512>}, {pipeline_mode = #tpu.pipeline_mode<synchronous>, transform_indices = @transform_1, window_bounds = array<i64: 24, 128>}, {pipeline_mode = #tpu.pipeline_mode<synchronous>, transform_indices = @transform_2, window_bounds = array<i64: 24, 1>}, {transform_indices = @transform_3, window_bounds = array<i64: 2, 512>}, {pipeline_mode = #tpu.pipeline_mode<synchronous>, transform_indices = @transform_4, window_bounds = array<i64: 24, 1>}, {transform_indices = @transform_5, window_bounds = array<i64: 1, 24, 512>}, {transform_indices = @transform_6, window_bounds = array<i64: 1, 24, 512>}]} {
    %c0 = arith.constant 0 : index
    %c0_0 = arith.constant 0 : index
    %0 = vector.load %arg3[%c0, %c0_0] : memref<24x128xbf16, #tpu.memory_space<vmem>>, vector<24x128xbf16>
    %c0_1 = arith.constant 0 : index
    %c0_2 = arith.constant 0 : index
    %c0_3 = arith.constant 0 : index
    %1 = vector.load %arg2[%c0_1, %c0_2, %c0_3] : memref<1x128x512xbf16, #tpu.memory_space<vmem>>, vector<1x128x512xbf16>
    %2 = vector.shape_cast %1 : vector<1x128x512xbf16> to vector<128x512xbf16>
    %cst = arith.constant dense<0.000000e+00> : vector<24x512xf32>
    %3 = tpu.matmul %0, %2, %cst {dimension_numbers = #tpu.dot_dimension_numbers<[1], [0], [0], [1], [0, 0, 1, 1], [], []>} : vector<24x128xbf16>, vector<128x512xbf16>, vector<24x512xf32> -> vector<24x512xf32>
    %c0_4 = arith.constant 0 : index
    %c0_5 = arith.constant 0 : index
    %4 = vector.load %arg4[%c0_4, %c0_5] : memref<24x1xf32, #tpu.memory_space<vmem>>, vector<24x1xf32>
    %5 = vector.broadcast %4 : vector<24x1xf32> to vector<24x512xf32>
    %6 = arith.addf %3, %5 : vector<24x512xf32>
    %c0_6 = arith.constant 0 : index
    %c0_7 = arith.constant 0 : index
    %c0_8 = arith.constant 0 : index
    %7 = vector.load %arg7[%c0_6, %c0_7, %c0_8] : memref<1x24x512xf32, #tpu.memory_space<vmem>>, vector<1x24x512xf32>
    %8 = vector.shape_cast %7 : vector<1x24x512xf32> to vector<24x512xf32>
    %9 = vector.shape_cast %6 : vector<24x512xf32> to vector<1x24x512xf32>
    tpu.vector_store %arg7[%c0_6, %c0_7, %c0_8], %9 {strides = array<i32>} : memref<1x24x512xf32, #tpu.memory_space<vmem>>, vector<1x24x512xf32>,
    %10 = arith.negf %6 : vector<24x512xf32>
    %11 = math.exp %10 : vector<24x512xf32>
    %cst_9 = arith.constant 1.000000e+00 : f32
    %12 = vector.broadcast %cst_9 : f32 to vector<24x512xf32>
    %13 = arith.addf %12, %11 : vector<24x512xf32>
    %14 = arith.divf %12, %13 : vector<24x512xf32>
    %15 = tpu.iota {dimensions = array<i32: 0>} : vector<24x1xi32>
    %c6_i32 = arith.constant 6 : i32
    %c0_i32 = arith.constant 0 : i32
    %16 = arith.cmpi eq, %c6_i32, %c0_i32 : i32
    %c1_i32 = arith.constant 1 : i32
    %17 = arith.select %16, %c1_i32, %c6_i32 : i32
    %18 = vector.broadcast %17 : i32 to vector<24x1xi32>
    %19 = arith.remsi %15, %18 : vector<24x1xi32>
    %c0_i32_10 = arith.constant 0 : i32
    %20 = vector.broadcast %c0_i32_10 : i32 to vector<24x1xi32>
    %21 = arith.cmpi ne, %19, %20 : vector<24x1xi32>
    %c0_i32_11 = arith.constant 0 : i32
    %22 = vector.broadcast %c0_i32_11 : i32 to vector<24x1xi32>
    %23 = arith.cmpi slt, %19, %22 : vector<24x1xi32>
    %c0_i32_12 = arith.constant 0 : i32
    %24 = arith.cmpi slt, %17, %c0_i32_12 : i32
    %25 = vector.broadcast %24 : i1 to vector<24x1xi1>
    %26 = vector.broadcast %25 : vector<24x1xi1> to vector<24x1xi1>
    %27 = arith.xori %23, %26 : vector<24x1xi1>
    %28 = arith.andi %27, %21 : vector<24x1xi1>
    %29 = vector.broadcast %17 : i32 to vector<24x1xi32>
    %30 = arith.addi %19, %29 : vector<24x1xi32>
    %31 = arith.select %28, %30, %19 : vector<24x1xi1>, vector<24x1xi32>
    %c0_i32_13 = arith.constant 0 : i32
    %32 = vector.broadcast %c0_i32_13 : i32 to vector<24x1xi32>
    %33 = arith.cmpi eq, %31, %32 : vector<24x1xi32>
    %c2_i32 = arith.constant 2 : i32
    %34 = vector.broadcast %c2_i32 : i32 to vector<24x1xi32>
    %35 = arith.cmpi slt, %31, %34 : vector<24x1xi32>
    %c2_i32_14 = arith.constant 2 : i32
    %36 = vector.broadcast %c2_i32_14 : i32 to vector<24x1xi32>
    %37 = arith.cmpi sge, %31, %36 : vector<24x1xi32>
    %c4_i32 = arith.constant 4 : i32
    %38 = vector.broadcast %c4_i32 : i32 to vector<24x1xi32>
    %39 = arith.cmpi slt, %31, %38 : vector<24x1xi32>
    %40 = arith.andi %37, %39 : vector<24x1xi1>
    %c0_15 = arith.constant 0 : index
    %c0_16 = arith.constant 0 : index
    %41 = vector.load %arg5[%c0_15, %c0_16] : memref<2x512xf32, #tpu.memory_space<vmem>>, vector<1x512xf32>
    %c1 = arith.constant 1 : index
    %c0_17 = arith.constant 0 : index
    %42 = vector.load %arg5[%c1, %c0_17] : memref<2x512xf32, #tpu.memory_space<vmem>>, vector<1x512xf32>
    %43 = vector.shape_cast %33 : vector<24x1xi1> to vector<24x1xi1>
    %44 = vector.broadcast %43 : vector<24x1xi1> to vector<24x512xi1>
    %45 = vector.shape_cast %41 : vector<1x512xf32> to vector<1x512xf32>
    %46 = vector.broadcast %45 : vector<1x512xf32> to vector<24x512xf32>
    %47 = vector.shape_cast %42 : vector<1x512xf32> to vector<1x512xf32>
    %48 = vector.broadcast %47 : vector<1x512xf32> to vector<24x512xf32>
    %49 = arith.select %44, %46, %48 : vector<24x512xi1>, vector<24x512xf32>
    %cst_18 = arith.constant 1.600000e+01 : f32
    %50 = vector.broadcast %cst_18 : f32 to vector<24x512xf32>
    %51 = arith.mulf %14, %50 : vector<24x512xf32>
    %52 = arith.addf %51, %49 : vector<24x512xf32>
    %c0_19 = arith.constant 0 : index
    %c0_20 = arith.constant 0 : index
    %53 = vector.load %arg6[%c0_19, %c0_20] : memref<24x1xf32, #tpu.memory_space<vmem>>, vector<24x1xf32>
    %54 = arith.mulf %14, %14 : vector<24x512xf32>
    %55 = vector.broadcast %53 : vector<24x1xf32> to vector<24x512xf32>
    %56 = arith.mulf %55, %54 : vector<24x512xf32>
    %57 = vector.shape_cast %40 : vector<24x1xi1> to vector<24x1xi1>
    %58 = vector.broadcast %57 : vector<24x1xi1> to vector<24x512xi1>
    %59 = arith.select %58, %56, %14 : vector<24x512xi1>, vector<24x512xf32>
    %60 = vector.shape_cast %35 : vector<24x1xi1> to vector<24x1xi1>
    %61 = vector.broadcast %60 : vector<24x1xi1> to vector<24x512xi1>
    %62 = arith.select %61, %52, %59 : vector<24x512xi1>, vector<24x512xf32>
    %c0_21 = arith.constant 0 : index
    %c0_22 = arith.constant 0 : index
    %c0_23 = arith.constant 0 : index
    %63 = vector.load %arg8[%c0_21, %c0_22, %c0_23] : memref<1x24x512xf32, #tpu.memory_space<vmem>>, vector<1x24x512xf32>
    %64 = vector.shape_cast %63 : vector<1x24x512xf32> to vector<24x512xf32>
    %65 = vector.shape_cast %62 : vector<24x512xf32> to vector<1x24x512xf32>
    tpu.vector_store %arg8[%c0_21, %c0_22, %c0_23], %65 {strides = array<i32>} : memref<1x24x512xf32, #tpu.memory_space<vmem>>, vector<1x24x512xf32>,
    return
  }
  func.func @transform_0(%arg0: i32, %arg1: i32) -> (i32, i32, i32) {
    %c0_i32 = arith.constant 0 : i32
    %c0_i32_0 = arith.constant 0 : i32
    return %arg0, %c0_i32, %arg1 : i32, i32, i32
  }
  func.func @transform_1(%arg0: i32, %arg1: i32) -> (i32, i32) {
    %c0_i32 = arith.constant 0 : i32
    %c0_i32_0 = arith.constant 0 : i32
    %c0_i32_1 = arith.constant 0 : i32
    return %c0_i32, %c0_i32_0 : i32, i32
  }
  func.func @transform_2(%arg0: i32, %arg1: i32) -> (i32, i32) {
    %c0_i32 = arith.constant 0 : i32
    %c0_i32_0 = arith.constant 0 : i32
    %c0_i32_1 = arith.constant 0 : i32
    return %c0_i32, %c0_i32_0 : i32, i32
  }
  func.func @transform_3(%arg0: i32, %arg1: i32) -> (i32, i32) {
    %c0_i32 = arith.constant 0 : i32
    %c0_i32_0 = arith.constant 0 : i32
    return %c0_i32, %arg1 : i32, i32
  }
  func.func @transform_4(%arg0: i32, %arg1: i32) -> (i32, i32) {
    %c0_i32 = arith.constant 0 : i32
    %c0_i32_0 = arith.constant 0 : i32
    %c0_i32_1 = arith.constant 0 : i32
    return %c0_i32, %c0_i32_0 : i32, i32
  }
  func.func @transform_5(%arg0: i32, %arg1: i32) -> (i32, i32, i32) {
    %c0_i32 = arith.constant 0 : i32
    %c0_i32_0 = arith.constant 0 : i32
    return %arg0, %c0_i32, %arg1 : i32, i32, i32
  }
  func.func @transform_6(%arg0: i32, %arg1: i32) -> (i32, i32, i32) {
    %c0_i32 = arith.constant 0 : i32
    %c0_i32_0 = arith.constant 0 : i32
    return %arg0, %c0_i32, %arg1 : i32, i32, i32
  }
}

</mosaic_0001>

<llo_original>
// kernel: tpu_custom_call.1
$region0: #{tpu_custom_call.1}
  #allocation0 [shape = 'u32[]', space=smem, size = 0x4, offset = 0x4, fixed_abs, tag = 'smem constant byte address 0x4 - core index']
  #allocation1 [shape = 'u32[144,128]{1,0:T(1,128)}', space=vmem, size = 0x12000, scoped, tag = 'internal scratch']
  %s0 = inlined_call_operand.hbm [shape: bf16[2,128,1024], index: 0, kind: input, shape index: {}]
  %s1 = inlined_call_operand.vmem [shape: bf16[24,128], index: 1, kind: input, shape index: {}]
  %s2 = inlined_call_operand.vmem [shape: f32[24,1], index: 2, kind: input, shape index: {}]
  %s3 = inlined_call_operand.vmem [shape: f32[2,1024], index: 3, kind: input, shape index: {}]
  %s4 = inlined_call_operand.vmem [shape: f32[24,1], index: 4, kind: input, shape index: {}]
  %s5 = inlined_call_operand.hbm [shape: f32[2,24,1024], index: 5, kind: output, shape index: {0}]
  %s6 = inlined_call_operand.hbm [shape: f32[2,24,1024], index: 6, kind: output, shape index: {1}]
  %7 = xla_tuple %s5, %s6
  %s8 = sld [smem:[#allocation0]]
  $region65: #{tpu_custom_call.1} parent=0
    _
  %s10 = ssub.s32 1, %s8
  %s11 = scalar_select 0, %s10, %s8
  $region1: #{tpu_custom_call.1} parent=0
    #allocation2 [shape = 'u8[262144]{0}', space=vmem, size = 0x40000, scoped, tag = 'input window, operand 0']
    #allocation3 [shape = 's32[2]{0}', space=sflag, size = 0x8, scoped, tag = 'scoped memory for tpu_custom_call.1']
    #allocation4 [shape = 's32[2]{0}', space=sflag, size = 0x8, scoped, tag = 'scoped memory for tpu_custom_call.1']
    #allocation5 [shape = 'u8[98304]{0}', space=vmem, size = 0x18000, scoped, tag = 'output window, operand 0']
    #allocation6 [shape = 'u8[98304]{0}', space=vmem, size = 0x18000, scoped, tag = 'output window, operand 1']
    #allocation7 [shape = 's32[2]{0}', space=sflag, size = 0x8, scoped, tag = 'scoped memory for tpu_custom_call.1']
    %12 = vsyncpa [#allocation3], 0
    %s13 = scalar_lea.sflag [#allocation3], 1
    %14 = vsyncpa %s13, 0
    %15 = vsyncpa [#allocation4], 0
    %s16 = scalar_lea.sflag [#allocation4], 1
    %17 = vsyncpa %s16, 0
    %18 = vsyncpa [#allocation7], 0
    %s19 = scalar_lea.sflag [#allocation7], 1
    %20 = vsyncpa %s19, 0
    loop: start=0, step=1, limit=6
    $region2: #{tpu_custom_call.1} parent=1 // loop_pre_header
      _
    $region3: #{tpu_custom_call.1} parent=1 // loop_header
      %s22 = sphi 0, %s26
      %p23 = scmp.ge.s32.totalorder %s22, 6
      %s29 = sphi 0, %s41
      %s30 = sphi 0, %s37
      %s31 = sphi 0, %s29
      %s32 = sphi 0, %s30
      %s33 = sphi 0, %s31
      %s34 = sphi 0, %s32
      %s46 = sphi 0, %s48
      %s49 = sphi 0, %s46
      %s50 = sphi 0, %s49
      %s66 = sphi 0, %s50
      %s70 = sphi 0, %s70
      %s72 = sphi 0, %s70
      %s73 = sphi 0, %s72
      %s87 = sphi 0, %s73
      %s91 = sphi 0, %s91
      %s93 = sphi 0, %s91
      %s94 = sphi 0, %s93
      %s108 = sphi 0, %s94
      %s114 = sphi 0, %s116
      %s117 = sphi 0, %s114
      %s118 = sphi 0, %s117
      %s134 = sphi 0, %s118
      %s138 = sphi 0, %s138
      %s140 = sphi 0, %s138
      %s141 = sphi 0, %s140
      %s155 = sphi 0, %s141
      %s163 = sphi 0, %s165
      %s166 = sphi 0, %s163
      %s167 = sphi 0, %s166
      %s183 = sphi 0, %s167
      %s191 = sphi 0, %s193
      %s194 = sphi 0, %s191
      %s195 = sphi 0, %s194
      %s211 = sphi 0, %s195
    $region4: #{tpu_custom_call.1} parent=1 // loop_header_branch
      %25 = sbr.rel (%p23) target = $region8
    $region5: #{tpu_custom_call.1} parent=1 // loop_body
      %s27 = ssub.s32 %s22, 1
      %s28 = ssub.s32 %s22, 2
      %s35 = sadd.s32 1, %s30
      %p36 = scmp.ge.s32.totalorder %s35, 2
      %s37 = scalar_select %p36, 0, %s35
      %s38 = sadd.s32 1, %s29
      %s39 = scalar_select %p36, %s38, %s29
      %p40 = scmp.ge.s32.totalorder %s39, 2
      %s41 = scalar_select %p40, 0, %s39
      %s42 = ssub.s32 %s29, %s41
      %s43 = ssub.s32 %s30, %s37
      %s44 = sor.u32 %s42, %s43
      %p45 = scmp.eq.s32.totalorder %s44, 0
      %s47 = sadd.s32 %s46, 1
      %s48 = scalar_select %p45, %s46, %s47
      %p51 = pneg %p45
      %p52 = scmp.eq.s32.totalorder %s22, 3
      %p53 = por %p51, %p52
      %p54 = scmp.ne.s32.totalorder %s46, %s49
      %p55 = scmp.eq.s32.totalorder %s22, 0
      %p56 = por %p54, %p55
      %p57 = scmp.ne.s32.totalorder %s46, %s49
      %p58 = scmp.eq.s32.totalorder %s27, 3
      %p59 = por %p57, %p58
      %p60 = scmp.ne.s32.totalorder %s49, %s50
      %p61 = scmp.eq.s32.totalorder %s27, 0
      %p62 = por %p60, %p61
      %p63 = scmp.ne.s32.totalorder %s49, %s50
      %p64 = scmp.eq.s32.totalorder %s28, 3
      %p65 = por %p63, %p64
      %p67 = scmp.ne.s32.totalorder %s50, %s66
      %p68 = scmp.eq.s32.totalorder %s28, 0
      %p69 = por %p67, %p68
      %s71 = sadd.s32 %s70, 1
      %p74 = scmp.eq.s32.totalorder %s22, 3
      %p75 = scmp.ne.s32.totalorder %s70, %s72
      %p76 = scmp.eq.s32.totalorder %s22, 0
      %p77 = por %p75, %p76
      %p78 = scmp.ne.s32.totalorder %s70, %s72
      %p79 = scmp.eq.s32.totalorder %s27, 3
      %p80 = por %p78, %p79
      %p81 = scmp.ne.s32.totalorder %s72, %s73
      %p82 = scmp.eq.s32.totalorder %s27, 0
      %p83 = por %p81, %p82
      %p84 = scmp.ne.s32.totalorder %s72, %s73
      %p85 = scmp.eq.s32.totalorder %s28, 3
      %p86 = por %p84, %p85
      %p88 = scmp.ne.s32.totalorder %s73, %s87
      %p89 = scmp.eq.s32.totalorder %s28, 0
      %p90 = por %p88, %p89
      %s92 = sadd.s32 %s91, 1
      %p95 = scmp.eq.s32.totalorder %s22, 3
      %p96 = scmp.ne.s32.totalorder %s91, %s93
      %p97 = scmp.eq.s32.totalorder %s22, 0
      %p98 = por %p96, %p97
      %p99 = scmp.ne.s32.totalorder %s91, %s93
      %p100 = scmp.eq.s32.totalorder %s27, 3
      %p101 = por %p99, %p100
      %p102 = scmp.ne.s32.totalorder %s93, %s94
      %p103 = scmp.eq.s32.totalorder %s27, 0
      %p104 = por %p102, %p103
      %p105 = scmp.ne.s32.totalorder %s93, %s94
      %p106 = scmp.eq.s32.totalorder %s28, 3
      %p107 = por %p105, %p106
      %p109 = scmp.ne.s32.totalorder %s94, %s108
      %p110 = scmp.eq.s32.totalorder %s28, 0
      %p111 = por %p109, %p110
      %s112 = ssub.s32 %s30, %s37
      %p113 = scmp.eq.s32.totalorder %s112, 0
      %s115 = sadd.s32 %s114, 1
      %s116 = scalar_select %p113, %s114, %s115
      %p119 = pneg %p113
      %p120 = scmp.eq.s32.totalorder %s22, 3
      %p121 = por %p119, %p120
      %p122 = scmp.ne.s32.totalorder %s114, %s117
      %p123 = scmp.eq.s32.totalorder %s22, 0
      %p124 = por %p122, %p123
      %p125 = scmp.ne.s32.totalorder %s114, %s117
      %p126 = scmp.eq.s32.totalorder %s27, 3
      %p127 = por %p125, %p126
      %p128 = scmp.ne.s32.totalorder %s117, %s118
      %p129 = scmp.eq.s32.totalorder %s27, 0
      %p130 = por %p128, %p129
      %p131 = scmp.ne.s32.totalorder %s117, %s118
      %p132 = scmp.eq.s32.totalorder %s28, 3
      %p133 = por %p131, %p132
      %p135 = scmp.ne.s32.totalorder %s118, %s134
      %p136 = scmp.eq.s32.totalorder %s28, 0
      %p137 = por %p135, %p136
      %s139 = sadd.s32 %s138, 1
      %p142 = scmp.eq.s32.totalorder %s22, 3
      %p143 = scmp.ne.s32.totalorder %s138, %s140
      %p144 = scmp.eq.s32.totalorder %s22, 0
      %p145 = por %p143, %p144
      %p146 = scmp.ne.s32.totalorder %s138, %s140
      %p147 = scmp.eq.s32.totalorder %s27, 3
      %p148 = por %p146, %p147
      %p149 = scmp.ne.s32.totalorder %s140, %s141
      %p150 = scmp.eq.s32.totalorder %s27, 0
      %p151 = por %p149, %p150
      %p152 = scmp.ne.s32.totalorder %s140, %s141
      %p153 = scmp.eq.s32.totalorder %s28, 3
      %p154 = por %p152, %p153
      %p156 = scmp.ne.s32.totalorder %s141, %s155
      %p157 = scmp.eq.s32.totalorder %s28, 0
      %p158 = por %p156, %p157
      %s159 = ssub.s32 %s29, %s41
      %s160 = ssub.s32 %s30, %s37
      %s161 = sor.u32 %s159, %s160
      %p162 = scmp.eq.s32.totalorder %s161, 0
      %s164 = sadd.s32 %s163, 1
      %s165 = scalar_select %p162, %s163, %s164
      %p168 = pneg %p162
      %p169 = scmp.eq.s32.totalorder %s22, 3
      %p170 = por %p168, %p169
      %p171 = scmp.ne.s32.totalorder %s163, %s166
      %p172 = scmp.eq.s32.totalorder %s22, 0
      %p173 = por %p171, %p172
      %p174 = scmp.ne.s32.totalorder %s163, %s166
      %p175 = scmp.eq.s32.totalorder %s27, 3
      %p176 = por %p174, %p175
      %p177 = scmp.ne.s32.totalorder %s166, %s167
      %p178 = scmp.eq.s32.totalorder %s27, 0
      %p179 = por %p177, %p178
      %p180 = scmp.ne.s32.totalorder %s166, %s167
      %p181 = scmp.eq.s32.totalorder %s28, 3
      %p182 = por %p180, %p181
      %p184 = scmp.ne.s32.totalorder %s167, %s183
      %p185 = scmp.eq.s32.totalorder %s28, 0
      %p186 = por %p184, %p185
      %s187 = ssub.s32 %s29, %s41
      %s188 = ssub.s32 %s30, %s37
      %s189 = sor.u32 %s187, %s188
      %p190 = scmp.eq.s32.totalorder %s189, 0
      %s192 = sadd.s32 %s191, 1
      %s193 = scalar_select %p190, %s191, %s192
      %p196 = pneg %p190
      %p197 = scmp.eq.s32.totalorder %s22, 3
      %p198 = por %p196, %p197
      %p199 = scmp.ne.s32.totalorder %s191, %s194
      %p200 = scmp.eq.s32.totalorder %s22, 0
      %p201 = por %p199, %p200
      %p202 = scmp.ne.s32.totalorder %s191, %s194
      %p203 = scmp.eq.s32.totalorder %s27, 3
      %p204 = por %p202, %p203
      %p205 = scmp.ne.s32.totalorder %s194, %s195
      %p206 = scmp.eq.s32.totalorder %s27, 0
      %p207 = por %p205, %p206
      %p208 = scmp.ne.s32.totalorder %s194, %s195
      %p209 = scmp.eq.s32.totalorder %s28, 3
      %p210 = por %p208, %p209
      %p212 = scmp.ne.s32.totalorder %s195, %s211
      %p213 = scmp.eq.s32.totalorder %s28, 0
      %p214 = por %p212, %p213
      %p215 = scmp.le.s32.totalorder 1, %s22
      %p216 = scmp.lt.s32.totalorder %s22, 5
      %p217 = pnand %p215, %p216
      %p218 = pneg %p217
      // Predicated region
      $region9: #{tpu_custom_call.1} parent=5 // pred_check
        _
      $region10: #{tpu_custom_call.1} parent=5 // pred_check_branch
        %220 = sbr.rel (%p217) target = $region12
      $region11: #{tpu_custom_call.1} parent=5 // pred_region
        %s221 = ssub.s32 %s22, 1
        // Predicated region
        $region13: #{tpu_custom_call.1} parent=11 // pred_check
          %p222 = pneg %p83
        $region14: #{tpu_custom_call.1} parent=11 // pred_check_branch
          %224 = sbr.rel (%p222) target = $region16
        $region15: #{tpu_custom_call.1} parent=11 // pred_region
          _
        $region16: #{tpu_custom_call.1} parent=11 // pred_fallthru
          _
        // Predicated region
        $region17: #{tpu_custom_call.1} parent=11 // pred_check
          %p225 = pneg %p104
        $region18: #{tpu_custom_call.1} parent=11 // pred_check_branch
          %227 = sbr.rel (%p225) target = $region20
        $region19: #{tpu_custom_call.1} parent=11 // pred_region
          _
        $region20: #{tpu_custom_call.1} parent=11 // pred_fallthru
          _
        // Predicated region
        $region21: #{tpu_custom_call.1} parent=11 // pred_check
          %p228 = pneg %p151
        $region22: #{tpu_custom_call.1} parent=11 // pred_check_branch
          %230 = sbr.rel (%p228) target = $region24
        $region23: #{tpu_custom_call.1} parent=11 // pred_region
          _
        $region24: #{tpu_custom_call.1} parent=11 // pred_fallthru
          _
      $region12: #{tpu_custom_call.1} parent=5 // pred_fallthru
        _
      %p231 = scmp.lt.s32.totalorder %s22, 4
      // Predicated region
      $region25: #{tpu_custom_call.1} parent=5 // pred_check
        %p232 = pneg %p231
      $region26: #{tpu_custom_call.1} parent=5 // pred_check_branch
        %234 = sbr.rel (%p232) target = $region28
      $region27: #{tpu_custom_call.1} parent=5 // pred_region
        // Predicated region
        $region29: #{tpu_custom_call.1} parent=27 // pred_check
          %p235 = pneg %p56
        $region30: #{tpu_custom_call.1} parent=27 // pred_check_branch
          %237 = sbr.rel (%p235) target = $region32
        $region31: #{tpu_custom_call.1} parent=27 // pred_region
          %s238 = sand.u32 %s46, 1
          %s239 = scalar_lea.sflag [#allocation3], %s238
          %s240 = sand.u32 %s46, 1
          %s241 = smul.addr %s240, 256
          %s242 = scalar_lea.vmem [#allocation2], %s241
          %s243 = smul.u32 4, %s30
          %s245 = ssub.s32 4096, 4096
          %246 = vsyncadd %s239, %s245
          %s247 = smul.addr %s29, 128
          %s248 = sadd.s32 %s243, %s247
          %s249 = smul.addr %s248, 64
          %s250 = scalar_lea.hbm %s0, %s249
          %s251 = sshll.u32 %s242, 4
          %s252 = int_to_ptr.vmem [resolvable:$true] %s251
          %257 = dma.hbm_to_vmem [thread:$0]  %s250, 4096, %s252, %s239, 512, 256, 16
        $region32: #{tpu_custom_call.1} parent=27 // pred_fallthru
          _
        // Predicated region
        $region33: #{tpu_custom_call.1} parent=27 // pred_check
          %p258 = pneg %p124
        $region34: #{tpu_custom_call.1} parent=27 // pred_check_branch
          %260 = sbr.rel (%p258) target = $region36
        $region35: #{tpu_custom_call.1} parent=27 // pred_region
          %s261 = smul.u32 4, %s30
          %p262 = scmp.lt.s32.totalorder %s261, 7
          %s263 = scalar_select %p262, %s261, 7
          %s264 = smul.addr %s263, 2
          %s265 = scalar_lea.vmem %s3, %s264
          %s266 = smul.u32 4, %s30
        $region36: #{tpu_custom_call.1} parent=27 // pred_fallthru
          _
      $region28: #{tpu_custom_call.1} parent=5 // pred_fallthru
        _
      %p267 = scmp.le.s32.totalorder 1, %s22
      %p268 = scmp.lt.s32.totalorder %s22, 5
      %p269 = pnand %p267, %p268
      %p270 = pneg %p269
      // Predicated region
      $region37: #{tpu_custom_call.1} parent=5 // pred_check
        _
      $region38: #{tpu_custom_call.1} parent=5 // pred_check_branch
        %272 = sbr.rel (%p269) target = $region40
      $region39: #{tpu_custom_call.1} parent=5 // pred_region
        %s273 = ssub.s32 %s22, 1
        %s274 = sand.u32 %s49, 1
        %s275 = scalar_lea.sflag [#allocation3], %s274
        %s276 = sand.u32 %s49, 1
        %s277 = smul.addr %s276, 256
        %s278 = scalar_lea.vmem [#allocation2], %s277
        // Predicated region
        $region41: #{tpu_custom_call.1} parent=39 // pred_check
          %p279 = pneg %p62
        $region42: #{tpu_custom_call.1} parent=39 // pred_check_branch
          %281 = sbr.rel (%p279) target = $region44
        $region43: #{tpu_custom_call.1} parent=39 // pred_region
          %282 = dma.done %s275, 4096
        $region44: #{tpu_custom_call.1} parent=39 // pred_fallthru
          _
        %s283 = sand.u32 %s49, 1
        %s284 = scalar_lea.sflag [#allocation3], %s283
        %s285 = sand.u32 %s49, 1
        %s286 = smul.addr %s285, 256
        %s287 = scalar_lea.vmem [#allocation2], %s286
        %p288 = pneg %p62
        %p289 = pneg %p59
        %p290 = pneg %p83
        %p291 = pneg %p80
        %p292 = pneg %p104
        %p293 = pneg %p101
        %s294 = smul.u32 4, %s32
        %p295 = scmp.lt.s32.totalorder %s294, 7
        %s296 = scalar_select %p295, %s294, 7
        %s297 = smul.addr %s296, 2
        %s298 = scalar_lea.vmem %s3, %s297
        %p299 = pneg %p130
        %p300 = pneg %p127
        %p301 = pneg %p151
        %p302 = pneg %p148
        %p303 = pneg %p179
        %p304 = pneg %p176
        %s305 = sand.u32 %s166, 1
        %s306 = scalar_lea.sflag [#allocation4], %s305
        %s307 = sand.u32 %s166, 1
        %s308 = smul.addr %s307, 96
        %s309 = scalar_lea.vmem [#allocation5], %s308
        %p310 = pneg %p207
        %p311 = pneg %p204
        %s312 = sand.u32 %s194, 1
        %s313 = scalar_lea.sflag [#allocation7], %s312
        %s314 = sand.u32 %s194, 1
        %s315 = smul.addr %s314, 96
        %s316 = scalar_lea.vmem [#allocation6], %s315
        %s317 = smul.u32 4, %s32
        %s318 = smul.u32 4, %s32
        %p319 = scmp.lt.s32.totalorder %s318, 7
        %s320 = scalar_select %p319, %s318, 7
        %s321 = smul.addr %s320, 2
        %s322 = scalar_lea.vmem %s3, %s321
        %s323 = smul.u32 4, %s32
        %s324 = smul.u32 4, %s32
        %s325 = smul.u32 4, %s32
        %v327 = vld [vmem:[%s1] sm:$0xf]
        %v328 = vld [vmem:[%s1 + $0x4] sm:$0xf]
        %v329 = vld [vmem:[%s1 + $0x8] sm:$0xf]
        %v330 = vld [vmem:[%s278] sm:$0xff]
        %v331 = vld [vmem:[%s278 + $0x8] sm:$0xff]
        %v332 = vld [vmem:[%s278 + $0x10] sm:$0xff]
        %v333 = vld [vmem:[%s278 + $0x18] sm:$0xff]
        %v334 = vld [vmem:[%s278 + $0x20] sm:$0xff]
        %v335 = vld [vmem:[%s278 + $0x28] sm:$0xff]
        %v336 = vld [vmem:[%s278 + $0x30] sm:$0xff]
        %v337 = vld [vmem:[%s278 + $0x38] sm:$0xff]
        %v338 = vld [vmem:[%s278 + $0x40] sm:$0xff]
        %v339 = vld [vmem:[%s278 + $0x48] sm:$0xff]
        %v340 = vld [vmem:[%s278 + $0x50] sm:$0xff]
        %v341 = vld [vmem:[%s278 + $0x58] sm:$0xff]
        %v342 = vld [vmem:[%s278 + $0x60] sm:$0xff]
        %v343 = vld [vmem:[%s278 + $0x68] sm:$0xff]
        %v344 = vld [vmem:[%s278 + $0x70] sm:$0xff]
        %v345 = vld [vmem:[%s278 + $0x78] sm:$0xff]
        %v346 = vld [vmem:[%s278 + $0x80] sm:$0xff]
        %v347 = vld [vmem:[%s278 + $0x88] sm:$0xff]
        %v348 = vld [vmem:[%s278 + $0x90] sm:$0xff]
        %v349 = vld [vmem:[%s278 + $0x98] sm:$0xff]
        %v350 = vld [vmem:[%s278 + $0xa0] sm:$0xff]
        %v351 = vld [vmem:[%s278 + $0xa8] sm:$0xff]
        %v352 = vld [vmem:[%s278 + $0xb0] sm:$0xff]
        %v353 = vld [vmem:[%s278 + $0xb8] sm:$0xff]
        %v354 = vld [vmem:[%s278 + $0xc0] sm:$0xff]
        %v355 = vld [vmem:[%s278 + $0xc8] sm:$0xff]
        %v356 = vld [vmem:[%s278 + $0xd0] sm:$0xff]
        %v357 = vld [vmem:[%s278 + $0xd8] sm:$0xff]
        %v358 = vld [vmem:[%s278 + $0xe0] sm:$0xff]
        %v359 = vld [vmem:[%s278 + $0xe8] sm:$0xff]
        %v360 = vld [vmem:[%s278 + $0xf0] sm:$0xff]
        %v361 = vld [vmem:[%s278 + $0xf8] sm:$0xff]
        %v362 = vld [vmem:[%s2] sm:$0xff]
        %v363 = vld [vmem:[%s2 + $0x8] sm:$0xff]
        %v364 = vld [vmem:[%s2 + $0x10] sm:$0xff]
        %366 = vset.pattern.permute.xlu0 0
        %367 = vperm.xlu0 %366, %v362
        %v368 = vpop.permute.xlu0 %367
        %371 = vset.pattern.permute.xlu0 0
        %372 = vperm.xlu0 %371, %v363
        %v373 = vpop.permute.xlu0 %372
        %376 = vset.pattern.permute.xlu0 0
        %377 = vperm.xlu0 %376, %v364
        %v378 = vpop.permute.xlu0 %377
        %v383 = vunpack.c.l.b16 %v327
        %v384 = vunpack.c.l.b16 %v328
        %v385 = vunpack.c.l.b16 %v329
        %v386 = vpack.c.b16 %v384, %v383
        %v387 = vpack.c.b16 %v385, %v385
        %v422 = vunpack.c.l.b16 %v330
        %v423 = vunpack.c.h.b16 %v330
        %v424 = vunpack.c.l.b16 %v331
        %v425 = vunpack.c.h.b16 %v331
        %v426 = vunpack.c.l.b16 %v332
        %v427 = vunpack.c.h.b16 %v332
        %v428 = vunpack.c.l.b16 %v333
        %v429 = vunpack.c.h.b16 %v333
        %v430 = vunpack.c.l.b16 %v334
        %v431 = vunpack.c.h.b16 %v334
        %v432 = vunpack.c.l.b16 %v335
        %v433 = vunpack.c.h.b16 %v335
        %v434 = vunpack.c.l.b16 %v336
        %v435 = vunpack.c.h.b16 %v336
        %v436 = vunpack.c.l.b16 %v337
        %v437 = vunpack.c.h.b16 %v337
        %v438 = vunpack.c.l.b16 %v338
        %v439 = vunpack.c.h.b16 %v338
        %v440 = vunpack.c.l.b16 %v339
        %v441 = vunpack.c.h.b16 %v339
        %v442 = vunpack.c.l.b16 %v340
        %v443 = vunpack.c.h.b16 %v340
        %v444 = vunpack.c.l.b16 %v341
        %v445 = vunpack.c.h.b16 %v341
        %v446 = vunpack.c.l.b16 %v342
        %v447 = vunpack.c.h.b16 %v342
        %v448 = vunpack.c.l.b16 %v343
        %v449 = vunpack.c.h.b16 %v343
        %v450 = vunpack.c.l.b16 %v344
        %v451 = vunpack.c.h.b16 %v344
        %v452 = vunpack.c.l.b16 %v345
        %v453 = vunpack.c.h.b16 %v345
        %v454 = vunpack.c.l.b16 %v346
        %v455 = vunpack.c.h.b16 %v346
        %v456 = vunpack.c.l.b16 %v347
        %v457 = vunpack.c.h.b16 %v347
        %v458 = vunpack.c.l.b16 %v348
        %v459 = vunpack.c.h.b16 %v348
        %v460 = vunpack.c.l.b16 %v349
        %v461 = vunpack.c.h.b16 %v349
        %v462 = vunpack.c.l.b16 %v350
        %v463 = vunpack.c.h.b16 %v350
        %v464 = vunpack.c.l.b16 %v351
        %v465 = vunpack.c.h.b16 %v351
        %v466 = vunpack.c.l.b16 %v352
        %v467 = vunpack.c.h.b16 %v352
        %v468 = vunpack.c.l.b16 %v353
        %v469 = vunpack.c.h.b16 %v353
        %v470 = vunpack.c.l.b16 %v354
        %v471 = vunpack.c.h.b16 %v354
        %v472 = vunpack.c.l.b16 %v355
        %v473 = vunpack.c.h.b16 %v355
        %v474 = vunpack.c.l.b16 %v356
        %v475 = vunpack.c.h.b16 %v356
        %v476 = vunpack.c.l.b16 %v357
        %v477 = vunpack.c.h.b16 %v357
        %v478 = vunpack.c.l.b16 %v358
        %v479 = vunpack.c.h.b16 %v358
        %v480 = vunpack.c.l.b16 %v359
        %v481 = vunpack.c.h.b16 %v359
        %v482 = vunpack.c.l.b16 %v360
        %v483 = vunpack.c.h.b16 %v360
        %v484 = vunpack.c.l.b16 %v361
        %v485 = vunpack.c.h.b16 %v361
        %v486 = vpack.c.b16 %v426, %v422
        %v487 = vpack.c.b16 %v427, %v423
        %v488 = vpack.c.b16 %v428, %v424
        %v489 = vpack.c.b16 %v429, %v425
        %v490 = vpack.c.b16 %v434, %v430
        %v491 = vpack.c.b16 %v435, %v431
        %v492 = vpack.c.b16 %v436, %v432
        %v493 = vpack.c.b16 %v437, %v433
        %v494 = vpack.c.b16 %v442, %v438
        %v495 = vpack.c.b16 %v443, %v439
        %v496 = vpack.c.b16 %v444, %v440
        %v497 = vpack.c.b16 %v445, %v441
        %v498 = vpack.c.b16 %v450, %v446
        %v499 = vpack.c.b16 %v451, %v447
        %v500 = vpack.c.b16 %v452, %v448
        %v501 = vpack.c.b16 %v453, %v449
        %v502 = vpack.c.b16 %v458, %v454
        %v503 = vpack.c.b16 %v459, %v455
        %v504 = vpack.c.b16 %v460, %v456
        %v505 = vpack.c.b16 %v461, %v457
        %v506 = vpack.c.b16 %v466, %v462
        %v507 = vpack.c.b16 %v467, %v463
        %v508 = vpack.c.b16 %v468, %v464
        %v509 = vpack.c.b16 %v469, %v465
        %v510 = vpack.c.b16 %v474, %v470
        %v511 = vpack.c.b16 %v475, %v471
        %v512 = vpack.c.b16 %v476, %v472
        %v513 = vpack.c.b16 %v477, %v473
        %v514 = vpack.c.b16 %v482, %v478
        %v515 = vpack.c.b16 %v483, %v479
        %v516 = vpack.c.b16 %v484, %v480
        %v517 = vpack.c.b16 %v485, %v481
        %550 = vmatprep.subr.bf16.mxu0 %v515
        %551 = vmatpush1.bf16.msra.mxu0 %v514
        %552 = vmatprep.subr.bf16.mxu0 %v511
        %553 = vmatpush1.bf16.msra.mxu0 %v510
        %554 = vmatprep.subr.bf16.mxu0 %v507
        %555 = vmatpush1.bf16.msra.mxu0 %v506
        %556 = vmatprep.subr.bf16.mxu0 %v503
        %557 = vmatpush1.bf16.msra.mxu0 %v502
        %558 = vmatprep.subr.bf16.mxu0 %v499
        %559 = vmatpush1.bf16.msra.mxu0 %v498
        %560 = vmatprep.subr.bf16.mxu0 %v495
        %561 = vmatpush1.bf16.msra.mxu0 %v494
        %562 = vmatprep.subr.bf16.mxu0 %v491
        %563 = vmatpush1.bf16.msra.mxu0 %v490
        %564 = vmatprep.subr.bf16.mxu0 %v487
        %565 = vmatpush1.bf16.msra.mxu0 %v486
        %566 = vmatprep.subr.bf16.mxu0 0
        %567 = vmatpush2.bf16.msra.mxu0 0
        %568 = vmatprep.subr.bf16.mxu0 0
        %569 = vmatpush2.bf16.msra.mxu0 0
        %570 = vmatprep.subr.bf16.mxu0 0
        %571 = vmatpush2.bf16.msra.mxu0 0
        %572 = vmatprep.subr.bf16.mxu0 0
        %573 = vmatpush2.bf16.msra.mxu0 0
        %574 = vmatprep.subr.bf16.mxu0 0
        %575 = vmatpush2.bf16.msra.mxu0 0
        %576 = vmatprep.subr.bf16.mxu0 0
        %577 = vmatpush2.bf16.msra.mxu0 0
        %578 = vmatprep.subr.bf16.mxu0 0
        %579 = vmatpush2.bf16.msra.mxu0 0
        %580 = vmatprep.subr.bf16.mxu0 0
        %581 = vmatpush2.bf16.msra.mxu0 0
        %582 = vmatprep.mubr.bf16.mxu0 0
        %583 = vmatmul.mubr.bf16.gmra.mxu0 %v386
        %v584 = vpop.f32.mrf.mxu0
        %v585 = vadd.f32 %v368, %v584
        %v586 = vpop.f32.mrf.mxu0
        %v587 = vadd.f32 %v368, %v586
        %v588 = vpop.f32.mrf.mxu0
        %v589 = vadd.f32 %v373, %v588
        %v590 = vpop.f32.mrf.mxu0
        %v591 = vadd.f32 %v373, %v590
        %592 = vmatprep.mubr.bf16.mxu0 0
        %593 = vmatmul.mubr.bf16.gmra.mxu0 %v387
        %v594 = vpop.f32.mrf.mxu0
        %v595 = vadd.f32 %v378, %v594
        %v596 = vpop.f32.mrf.mxu0
        %v597 = vadd.f32 %v378, %v596
        %v598 = vpop.f32.mrf.mxu0
        %v599 = vpop.f32.mrf.mxu0
        %600 = vdwg.mxu0
        %601 = vmatprep.subr.bf16.mxu0 %v517
        %602 = vmatpush1.bf16.msra.mxu0 %v516
        %603 = vmatprep.subr.bf16.mxu0 %v513
        %604 = vmatpush1.bf16.msra.mxu0 %v512
        %605 = vmatprep.subr.bf16.mxu0 %v509
        %606 = vmatpush1.bf16.msra.mxu0 %v508
        %607 = vmatprep.subr.bf16.mxu0 %v505
        %608 = vmatpush1.bf16.msra.mxu0 %v504
        %609 = vmatprep.subr.bf16.mxu0 %v501
        %610 = vmatpush1.bf16.msra.mxu0 %v500
        %611 = vmatprep.subr.bf16.mxu0 %v497
        %612 = vmatpush1.bf16.msra.mxu0 %v496
        %613 = vmatprep.subr.bf16.mxu0 %v493
        %614 = vmatpush1.bf16.msra.mxu0 %v492
        %615 = vmatprep.subr.bf16.mxu0 %v489
        %616 = vmatpush1.bf16.msra.mxu0 %v488
        %617 = vmatprep.subr.bf16.mxu0 0
        %618 = vmatpush2.bf16.msra.mxu0 0
        %619 = vmatprep.subr.bf16.mxu0 0
        %620 = vmatpush2.bf16.msra.mxu0 0
        %621 = vmatprep.subr.bf16.mxu0 0
        %622 = vmatpush2.bf16.msra.mxu0 0
        %623 = vmatprep.subr.bf16.mxu0 0
        %624 = vmatpush2.bf16.msra.mxu0 0
        %625 = vmatprep.subr.bf16.mxu0 0
        %626 = vmatpush2.bf16.msra.mxu0 0
        %627 = vmatprep.subr.bf16.mxu0 0
        %628 = vmatpush2.bf16.msra.mxu0 0
        %629 = vmatprep.subr.bf16.mxu0 0
        %630 = vmatpush2.bf16.msra.mxu0 0
        %631 = vmatprep.subr.bf16.mxu0 0
        %632 = vmatpush2.bf16.msra.mxu0 0
        %633 = vmatprep.mubr.bf16.mxu0 0
        %634 = vmatmul.mubr.bf16.gmra.mxu0 %v386
        %v635 = vpop.f32.mrf.mxu0
        %v636 = vadd.f32 %v368, %v635
        %v637 = vpop.f32.mrf.mxu0
        %v638 = vadd.f32 %v368, %v637
        %v639 = vpop.f32.mrf.mxu0
        %v640 = vadd.f32 %v373, %v639
        %v641 = vpop.f32.mrf.mxu0
        %v642 = vadd.f32 %v373, %v641
        %643 = vmatprep.mubr.bf16.mxu0 0
        %644 = vmatmul.mubr.bf16.gmra.mxu0 %v387
        %v645 = vpop.f32.mrf.mxu0
        %v646 = vadd.f32 %v378, %v645
        %v647 = vpop.f32.mrf.mxu0
        %v648 = vadd.f32 %v378, %v647
        %v649 = vpop.f32.mrf.mxu0
        %v650 = vpop.f32.mrf.mxu0
        %651 = vdwg.mxu0
        %652 = vst [vmem:[%s309] sm:$0xff] %v585
        %653 = vst [vmem:[%s309 + $0x8] sm:$0xff] %v587
        %654 = vst [vmem:[%s309 + $0x10] sm:$0xff] %v636
        %655 = vst [vmem:[%s309 + $0x18] sm:$0xff] %v638
        %656 = vst [vmem:[%s309 + $0x20] sm:$0xff] %v589
        %657 = vst [vmem:[%s309 + $0x28] sm:$0xff] %v591
        %658 = vst [vmem:[%s309 + $0x30] sm:$0xff] %v640
        %659 = vst [vmem:[%s309 + $0x38] sm:$0xff] %v642
        %660 = vst [vmem:[%s309 + $0x40] sm:$0xff] %v595
        %661 = vst [vmem:[%s309 + $0x48] sm:$0xff] %v597
        %662 = vst [vmem:[%s309 + $0x50] sm:$0xff] %v646
        %663 = vst [vmem:[%s309 + $0x58] sm:$0xff] %v648
        %v664 = vxor.u32 %v585, 2147483648
        %v665 = vxor.u32 %v587, 2147483648
        %v666 = vxor.u32 %v636, 2147483648
        %v667 = vxor.u32 %v638, 2147483648
        %v668 = vxor.u32 %v589, 2147483648
        %v669 = vxor.u32 %v591, 2147483648
        %v670 = vxor.u32 %v640, 2147483648
        %v671 = vxor.u32 %v642, 2147483648
        %v672 = vxor.u32 %v595, 2147483648
        %v673 = vxor.u32 %v597, 2147483648
        %v674 = vxor.u32 %v646, 2147483648
        %v675 = vxor.u32 %v648, 2147483648
        %v676 = vmul.f32 %v664, 1.442695
        %v677 = vpow.pop %v676
        %v678 = vmul.f32 %v665, 1.442695
        %v679 = vpow.pop %v678
        %v680 = vmul.f32 %v666, 1.442695
        %v681 = vpow.pop %v680
        %v682 = vmul.f32 %v667, 1.442695
        %v683 = vpow.pop %v682
        %v684 = vmul.f32 %v668, 1.442695
        %v685 = vpow.pop %v684
        %v686 = vmul.f32 %v669, 1.442695
        %v687 = vpow.pop %v686
        %v688 = vmul.f32 %v670, 1.442695
        %v689 = vpow.pop %v688
        %v690 = vmul.f32 %v671, 1.442695
        %v691 = vpow.pop %v690
        %v692 = vmul.f32 %v672, 1.442695
        %v693 = vpow.pop %v692
        %v694 = vmul.f32 %v673, 1.442695
        %v695 = vpow.pop %v694
        %v696 = vmul.f32 %v674, 1.442695
        %v697 = vpow.pop %v696
        %v698 = vmul.f32 %v675, 1.442695
        %v699 = vpow.pop %v698
        %v700 = vadd.f32 %v677, 1.0
        %v701 = vadd.f32 %v679, 1.0
        %v702 = vadd.f32 %v681, 1.0
        %v703 = vadd.f32 %v683, 1.0
        %v704 = vadd.f32 %v685, 1.0
        %v705 = vadd.f32 %v687, 1.0
        %v706 = vadd.f32 %v689, 1.0
        %v707 = vadd.f32 %v691, 1.0
        %v708 = vadd.f32 %v693, 1.0
        %v709 = vadd.f32 %v695, 1.0
        %v710 = vadd.f32 %v697, 1.0
        %v711 = vadd.f32 %v699, 1.0
        %v712 = vrcp.pop %v700
        %v713 = vmul.f32 1.0, %v712
        %v714 = vrcp.pop %v701
        %v715 = vmul.f32 1.0, %v714
        %v716 = vrcp.pop %v702
        %v717 = vmul.f32 1.0, %v716
        %v718 = vrcp.pop %v703
        %v719 = vmul.f32 1.0, %v718
        %v720 = vrcp.pop %v704
        %v721 = vmul.f32 1.0, %v720
        %v722 = vrcp.pop %v705
        %v723 = vmul.f32 1.0, %v722
        %v724 = vrcp.pop %v706
        %v725 = vmul.f32 1.0, %v724
        %v726 = vrcp.pop %v707
        %v727 = vmul.f32 1.0, %v726
        %v728 = vrcp.pop %v708
        %v729 = vmul.f32 1.0, %v728
        %v730 = vrcp.pop %v709
        %v731 = vmul.f32 1.0, %v730
        %v732 = vrcp.pop %v710
        %v733 = vmul.f32 1.0, %v732
        %v734 = vrcp.pop %v711
        %v735 = vmul.f32 1.0, %v734
        %v736 = vlaneseq
        %v737 = vshrl.u32 %v736, 7
        %v738 = vadd.s32 %v737, 8
        %v739 = vadd.s32 %v737, 16
        %vm740 = vcmp.lt.s32.totalorder %v737, 0
        %v741 = vsub.s32 0, %v737
        %v742 = vsel %vm740, %v741, %v737
        %v743 = vmul.u32.u64.compose %v742, 2863311531
        %v744 = vextract.low.u32 %v743
        %v745 = vextract.high.u32 %v743
        %v746 = vshrl.u32 %v745, 2
        %v747 = vmul.u32 %v746, 6
        %v748 = vsub.s32 %v742, %v747
        %v749 = vsub.s32 0, %v748
        %v750 = vsel %vm740, %v749, %v748
        %vm751 = vcmp.lt.s32.totalorder %v738, 0
        %v752 = vsub.s32 0, %v738
        %v753 = vsel %vm751, %v752, %v738
        %v754 = vmul.u32.u64.compose %v753, 2863311531
        %v755 = vextract.low.u32 %v754
        %v756 = vextract.high.u32 %v754
        %v757 = vshrl.u32 %v756, 2
        %v758 = vmul.u32 %v757, 6
        %v759 = vsub.s32 %v753, %v758
        %v760 = vsub.s32 0, %v759
        %v761 = vsel %vm751, %v760, %v759
        %vm762 = vcmp.lt.s32.totalorder %v739, 0
        %v763 = vsub.s32 0, %v739
        %v764 = vsel %vm762, %v763, %v739
        %v765 = vmul.u32.u64.compose %v764, 2863311531
        %v766 = vextract.low.u32 %v765
        %v767 = vextract.high.u32 %v765
        %v768 = vshrl.u32 %v767, 2
        %v769 = vmul.u32 %v768, 6
        %v770 = vsub.s32 %v764, %v769
        %v771 = vsub.s32 0, %v770
        %v772 = vsel %vm762, %v771, %v770
        %vm773 = vcmp.ne.s32.totalorder %v750, 0
        %vm774 = vcmp.ne.s32.totalorder %v761, 0
        %vm775 = vcmp.ne.s32.totalorder %v772, 0
        %vm776 = vcmp.lt.s32.totalorder %v750, 0
        %vm777 = vcmp.lt.s32.totalorder %v761, 0
        %vm778 = vcmp.lt.s32.totalorder %v772, 0
        %vm779 = vmand %vm776, %vm773
        %vm780 = vmand %vm777, %vm774
        %vm781 = vmand %vm778, %vm775
        %v782 = vadd.s32 %v750, 6
        %v783 = vadd.s32 %v761, 6
        %v784 = vadd.s32 %v772, 6
        %v785 = vsel %vm779, %v782, %v750
        %v786 = vsel %vm780, %v783, %v761
        %v787 = vsel %vm781, %v784, %v772
        %vm788 = vcmp.eq.s32.totalorder %v785, 0
        %vm789 = vcmp.eq.s32.totalorder %v786, 0
        %vm790 = vcmp.eq.s32.totalorder %v787, 0
        %vm791 = vcmp.lt.s32.totalorder %v785, 2
        %vm792 = vcmp.lt.s32.totalorder %v786, 2
        %vm793 = vcmp.lt.s32.totalorder %v787, 2
        %vm794 = vcmp.ge.s32.totalorder %v785, 2
        %vm795 = vcmp.ge.s32.totalorder %v786, 2
        %vm796 = vcmp.ge.s32.totalorder %v787, 2
        %vm797 = vcmp.lt.s32.totalorder %v785, 4
        %vm798 = vcmp.lt.s32.totalorder %v786, 4
        %vm799 = vcmp.lt.s32.totalorder %v787, 4
        %vm800 = vmand %vm794, %vm797
        %vm801 = vmand %vm795, %vm798
        %vm802 = vmand %vm796, %vm799
        %v803 = vld [vmem:[%s322] ss:$2 sm:$0xf]
        %s804 = scalar_lea.vmem %s322, 1
        %v805 = vld [vmem:[%s804] ss:$2 sm:$0xf]
        %v806 = vsel %vm788, 1, 0
        %v807 = vsel %vm789, 1, 0
        %v808 = vsel %vm790, 1, 0
        %vm809 = vcmp.eq.s32.totalorder %v806, 1
        %vm810 = vcmp.eq.s32.totalorder %v807, 1
        %vm811 = vcmp.eq.s32.totalorder %v808, 1
        %v813 = vlaneseq
        %v814 = vshrl.u32 %v813, 7
        %v815 = vsub.s32 0, %v814
        %v816 = vrot.slane %v803, %v815
        %v817 = vlaneseq
        %v818 = vshrl.u32 %v817, 7
        %v819 = vsub.s32 1, %v818
        %v820 = vrot.slane %v803, %v819
        %v821 = vlaneseq
        %v822 = vshrl.u32 %v821, 7
        %v823 = vsub.s32 2, %v822
        %v824 = vrot.slane %v803, %v823
        %v825 = vlaneseq
        %v826 = vshrl.u32 %v825, 7
        %v827 = vsub.s32 3, %v826
        %v828 = vrot.slane %v803, %v827
        %v834 = vlaneseq
        %v835 = vshrl.u32 %v834, 7
        %v836 = vsub.s32 0, %v835
        %v837 = vrot.slane %v805, %v836
        %v838 = vlaneseq
        %v839 = vshrl.u32 %v838, 7
        %v840 = vsub.s32 1, %v839
        %v841 = vrot.slane %v805, %v840
        %v842 = vlaneseq
        %v843 = vshrl.u32 %v842, 7
        %v844 = vsub.s32 2, %v843
        %v845 = vrot.slane %v805, %v844
        %v846 = vlaneseq
        %v847 = vshrl.u32 %v846, 7
        %v848 = vsub.s32 3, %v847
        %v849 = vrot.slane %v805, %v848
        %v854 = vsel %vm809, %v816, %v837
        %v855 = vsel %vm809, %v820, %v841
        %v856 = vsel %vm809, %v824, %v845
        %v857 = vsel %vm809, %v828, %v849
        %v858 = vsel %vm810, %v816, %v837
        %v859 = vsel %vm810, %v820, %v841
        %v860 = vsel %vm810, %v824, %v845
        %v861 = vsel %vm810, %v828, %v849
        %v862 = vsel %vm811, %v816, %v837
        %v863 = vsel %vm811, %v820, %v841
        %v864 = vsel %vm811, %v824, %v845
        %v865 = vsel %vm811, %v828, %v849
        %v866 = vmul.f32 %v713, 16.0
        %v867 = vmul.f32 %v715, 16.0
        %v868 = vmul.f32 %v717, 16.0
        %v869 = vmul.f32 %v719, 16.0
        %v870 = vmul.f32 %v721, 16.0
        %v871 = vmul.f32 %v723, 16.0
        %v872 = vmul.f32 %v725, 16.0
        %v873 = vmul.f32 %v727, 16.0
        %v874 = vmul.f32 %v729, 16.0
        %v875 = vmul.f32 %v731, 16.0
        %v876 = vmul.f32 %v733, 16.0
        %v877 = vmul.f32 %v735, 16.0
        %v878 = vadd.f32 %v866, %v854
        %v879 = vadd.f32 %v867, %v855
        %v880 = vadd.f32 %v868, %v856
        %v881 = vadd.f32 %v869, %v857
        %v882 = vadd.f32 %v870, %v858
        %v883 = vadd.f32 %v871, %v859
        %v884 = vadd.f32 %v872, %v860
        %v885 = vadd.f32 %v873, %v861
        %v886 = vadd.f32 %v874, %v862
        %v887 = vadd.f32 %v875, %v863
        %v888 = vadd.f32 %v876, %v864
        %v889 = vadd.f32 %v877, %v865
        %v890 = vld [vmem:[%s4] sm:$0xff]
        %v891 = vld [vmem:[%s4 + $0x8] sm:$0xff]
        %v892 = vld [vmem:[%s4 + $0x10] sm:$0xff]
        %v893 = vmul.f32 %v713, %v713
        %v894 = vmul.f32 %v715, %v715
        %v895 = vmul.f32 %v717, %v717
        %v896 = vmul.f32 %v719, %v719
        %v897 = vmul.f32 %v721, %v721
        %v898 = vmul.f32 %v723, %v723
        %v899 = vmul.f32 %v725, %v725
        %v900 = vmul.f32 %v727, %v727
        %v901 = vmul.f32 %v729, %v729
        %v902 = vmul.f32 %v731, %v731
        %v903 = vmul.f32 %v733, %v733
        %v904 = vmul.f32 %v735, %v735
        %906 = vset.pattern.permute.xlu0 0
        %907 = vperm.xlu0 %906, %v890
        %v908 = vpop.permute.xlu0 %907
        %911 = vset.pattern.permute.xlu0 0
        %912 = vperm.xlu0 %911, %v891
        %v913 = vpop.permute.xlu0 %912
        %916 = vset.pattern.permute.xlu0 0
        %917 = vperm.xlu0 %916, %v892
        %v918 = vpop.permute.xlu0 %917
        %v920 = vmul.f32 %v908, %v893
        %v921 = vmul.f32 %v908, %v894
        %v922 = vmul.f32 %v908, %v895
        %v923 = vmul.f32 %v908, %v896
        %v924 = vmul.f32 %v913, %v897
        %v925 = vmul.f32 %v913, %v898
        %v926 = vmul.f32 %v913, %v899
        %v927 = vmul.f32 %v913, %v900
        %v928 = vmul.f32 %v918, %v901
        %v929 = vmul.f32 %v918, %v902
        %v930 = vmul.f32 %v918, %v903
        %v931 = vmul.f32 %v918, %v904
        %v932 = vsel %vm800, 1, 0
        %v933 = vsel %vm801, 1, 0
        %v934 = vsel %vm802, 1, 0
        %vm935 = vcmp.eq.s32.totalorder %v932, 1
        %vm936 = vcmp.eq.s32.totalorder %v933, 1
        %vm937 = vcmp.eq.s32.totalorder %v934, 1
        %v938 = vsel %vm935, %v920, %v713
        %v939 = vsel %vm935, %v921, %v715
        %v940 = vsel %vm935, %v922, %v717
        %v941 = vsel %vm935, %v923, %v719
        %v942 = vsel %vm936, %v924, %v721
        %v943 = vsel %vm936, %v925, %v723
        %v944 = vsel %vm936, %v926, %v725
        %v945 = vsel %vm936, %v927, %v727
        %v946 = vsel %vm937, %v928, %v729
        %v947 = vsel %vm937, %v929, %v731
        %v948 = vsel %vm937, %v930, %v733
        %v949 = vsel %vm937, %v931, %v735
        %v950 = vsel %vm791, 1, 0
        %v951 = vsel %vm792, 1, 0
        %v952 = vsel %vm793, 1, 0
        %vm953 = vcmp.eq.s32.totalorder %v950, 1
        %vm954 = vcmp.eq.s32.totalorder %v951, 1
        %vm955 = vcmp.eq.s32.totalorder %v952, 1
        %v956 = vsel %vm953, %v878, %v938
        %v957 = vsel %vm953, %v879, %v939
        %v958 = vsel %vm953, %v880, %v940
        %v959 = vsel %vm953, %v881, %v941
        %v960 = vsel %vm954, %v882, %v942
        %v961 = vsel %vm954, %v883, %v943
        %v962 = vsel %vm954, %v884, %v944
        %v963 = vsel %vm954, %v885, %v945
        %v964 = vsel %vm955, %v886, %v946
        %v965 = vsel %vm955, %v887, %v947
        %v966 = vsel %vm955, %v888, %v948
        %v967 = vsel %vm955, %v889, %v949
        %968 = vst [vmem:[%s316] sm:$0xff] %v956
        %969 = vst [vmem:[%s316 + $0x8] sm:$0xff] %v957
        %970 = vst [vmem:[%s316 + $0x10] sm:$0xff] %v958
        %971 = vst [vmem:[%s316 + $0x18] sm:$0xff] %v959
        %972 = vst [vmem:[%s316 + $0x20] sm:$0xff] %v960
        %973 = vst [vmem:[%s316 + $0x28] sm:$0xff] %v961
        %974 = vst [vmem:[%s316 + $0x30] sm:$0xff] %v962
        %975 = vst [vmem:[%s316 + $0x38] sm:$0xff] %v963
        %976 = vst [vmem:[%s316 + $0x40] sm:$0xff] %v964
        %977 = vst [vmem:[%s316 + $0x48] sm:$0xff] %v965
        %978 = vst [vmem:[%s316 + $0x50] sm:$0xff] %v966
        %979 = vst [vmem:[%s316 + $0x58] sm:$0xff] %v967
        %s980 = sand.u32 %s166, 1
        %s981 = scalar_lea.sflag [#allocation4], %s980
        %s982 = sand.u32 %s166, 1
        %s983 = smul.addr %s982, 96
        %s984 = scalar_lea.vmem [#allocation5], %s983
        %s985 = sand.u32 %s194, 1
        %s986 = scalar_lea.sflag [#allocation7], %s985
        %s987 = sand.u32 %s194, 1
        %s988 = smul.addr %s987, 96
        %s989 = scalar_lea.vmem [#allocation6], %s988
        // Predicated region
        $region45: #{tpu_custom_call.1} parent=39 // pred_check
          %p990 = pneg %p176
        $region46: #{tpu_custom_call.1} parent=39 // pred_check_branch
          %992 = sbr.rel (%p990) target = $region48
        $region47: #{tpu_custom_call.1} parent=39 // pred_region
          %s993 = smul.u32 4, %s32
          %s995 = ssub.s32 1536, 1536
          %996 = vsyncadd %s981, %s995
          %s997 = smul.addr %s31, 24
          %s998 = sadd.s32 %s993, %s997
          %s999 = smul.addr %s998, 128
          %s1000 = scalar_lea.hbm %s5, %s999
          %s1001 = sshll.u32 %s984, 4
          %s1002 = int_to_ptr.vmem [resolvable:$true] %s1001
          %1007 = dma.vmem_to_hbm [thread:$0]  %s1002, 1536, %s1000, %s981, 512, 1024, 32
        $region48: #{tpu_custom_call.1} parent=39 // pred_fallthru
          _
        // Predicated region
        $region49: #{tpu_custom_call.1} parent=39 // pred_check
          %p1008 = pneg %p204
        $region50: #{tpu_custom_call.1} parent=39 // pred_check_branch
          %1010 = sbr.rel (%p1008) target = $region52
        $region51: #{tpu_custom_call.1} parent=39 // pred_region
          %s1011 = smul.u32 4, %s32
          %s1013 = ssub.s32 1536, 1536
          %1014 = vsyncadd %s986, %s1013
          %s1015 = smul.addr %s31, 24
          %s1016 = sadd.s32 %s1011, %s1015
          %s1017 = smul.addr %s1016, 128
          %s1018 = scalar_lea.hbm %s6, %s1017
          %s1019 = sshll.u32 %s989, 4
          %s1020 = int_to_ptr.vmem [resolvable:$true] %s1019
          %1025 = dma.vmem_to_hbm [thread:$0]  %s1020, 1536, %s1018, %s986, 512, 1024, 32
        $region52: #{tpu_custom_call.1} parent=39 // pred_fallthru
          _
      $region40: #{tpu_custom_call.1} parent=5 // pred_fallthru
        _
      %p1026 = scmp.le.s32.totalorder 2, %s22
      // Predicated region
      $region53: #{tpu_custom_call.1} parent=5 // pred_check
        %p1027 = pneg %p1026
      $region54: #{tpu_custom_call.1} parent=5 // pred_check_branch
        %1029 = sbr.rel (%p1027) target = $region56
      $region55: #{tpu_custom_call.1} parent=5 // pred_region
        %s1030 = ssub.s32 %s22, 2
        // Predicated region
        $region57: #{tpu_custom_call.1} parent=55 // pred_check
          %p1031 = pneg %p182
        $region58: #{tpu_custom_call.1} parent=55 // pred_check_branch
          %1033 = sbr.rel (%p1031) target = $region60
        $region59: #{tpu_custom_call.1} parent=55 // pred_region
          %s1034 = sand.u32 %s167, 1
          %s1035 = scalar_lea.sflag [#allocation4], %s1034
          %s1036 = sand.u32 %s167, 1
          %s1037 = smul.addr %s1036, 96
          %s1038 = scalar_lea.vmem [#allocation5], %s1037
          %1039 = dma.done %s1035, 1536
        $region60: #{tpu_custom_call.1} parent=55 // pred_fallthru
          _
        // Predicated region
        $region61: #{tpu_custom_call.1} parent=55 // pred_check
          %p1040 = pneg %p210
        $region62: #{tpu_custom_call.1} parent=55 // pred_check_branch
          %1042 = sbr.rel (%p1040) target = $region64
        $region63: #{tpu_custom_call.1} parent=55 // pred_region
          %s1043 = sand.u32 %s195, 1
          %s1044 = scalar_lea.sflag [#allocation7], %s1043
          %s1045 = sand.u32 %s195, 1
          %s1046 = smul.addr %s1045, 96
          %s1047 = scalar_lea.vmem [#allocation6], %s1046
          %1048 = dma.done %s1044, 1536
        $region64: #{tpu_custom_call.1} parent=55 // pred_fallthru
          _
      $region56: #{tpu_custom_call.1} parent=5 // pred_fallthru
        _
    $region6: #{tpu_custom_call.1} parent=1 // loop_footer
      %s26 = sadd.s32 1, %s22
    $region7: #{tpu_custom_call.1} parent=1 // loop_footer_branch
      %21 = sbr.rel target = $region3
    $region8: #{tpu_custom_call.1} parent=1 // loop_exit
      _
    %1049 = vsyncpa [#allocation3], 1
    %s1050 = scalar_lea.sflag [#allocation3], 1
    %1051 = vsyncpa %s1050, 1
    %1052 = vsyncpa [#allocation4], 1
    %s1053 = scalar_lea.sflag [#allocation4], 1
    %1054 = vsyncpa %s1053, 1
    %1055 = vsyncpa [#allocation7], 1
    %s1056 = scalar_lea.sflag [#allocation7], 1
    %1057 = vsyncpa %s1056, 1

</llo_original>
